<compile_context>
chip_gen: v5e
topology: v5e:2x2
jax: 0.10.0
libtpu: 0.0.40
codegen_flags: <defaults>
</compile_context>

<pallas_src>
import functools

import numpy as np

import jax
import jax.numpy as jnp
from jax.experimental import pallas as pl
from jax.experimental.pallas import tpu as pltpu


def _round_up(x, m):
    return (x + m - 1) // m * m


def _build_avg_matrix(L, kernel_size):
    """Constant (L, L) averaging matrix with replicate padding folded in.

    mean[t] = sum_u A[t, u] * x[u], where
    A[t, u] = (# of d in [-pad, pad] with clamp(t + d, 0, L-1) == u) / k.
    """
    pad = (kernel_size - 1) // 2
    A = np.zeros((L, L), dtype=np.float64)
    rows = np.arange(L)
    for d in range(-pad, pad + 1):
        src = np.clip(rows + d, 0, L - 1)
        np.add.at(A, (rows, src), 1.0)
    A /= float(kernel_size)
    return jnp.asarray(A, dtype=jnp.float32)


def _series_decomp_kernel(a_ref, x_ref, res_ref, mean_ref, *, tb):
    # a_ref: (L, L) f32 averaging matrix (VMEM-resident across the grid).
    # x_ref / res_ref / mean_ref: (TB, L, TC).
    a = a_ref[...]  # hoisted once per grid step

    def body(b, carry):
        xb = x_ref[b].astype(jnp.float32)                      # (L, TC)
        mb = jnp.dot(a, xb, preferred_element_type=jnp.float32)  # MXU
        mean_ref[b] = mb.astype(mean_ref.dtype)
        res_ref[b] = (xb - mb).astype(res_ref.dtype)
        return carry

    jax.lax.fori_loop(0, tb, body, 0, unroll=(tb <= 8))


def series_decomp(x, kernel_size):
    """x: (B, L, C). Returns (res, moving_mean), both (B, L, C)."""
    assert kernel_size % 2 == 1, "odd kernel_size required for shape-preserving decomp"
    B, L, C = x.shape
    itemsize = jnp.dtype(x.dtype).itemsize

    # Channel blocking: keep full C for typical (small/medium) channel counts;
    # split very wide C into 512-lane blocks (multiple of 128 -> always legal).
    TC = 512 if C > 512 else C
    grid_c = pl.cdiv(C, TC)

    # Per-batch-row VMEM footprint of one block, accounting for lane padding
    # to 128 and sublane padding to 8 (matters for small C):
    # 1 input row + 2 output rows + ~3 f32 temporaries (xb, mb, res).
    lanes = _round_up(TC, 128)
    subl = _round_up(L, 8)
    row_native = subl * lanes * itemsize
    row_f32 = subl * lanes * 4
    per_row = 3 * row_native + 3 * row_f32

    target_block_bytes = 6 * 1024 * 1024
    TB = max(1, min(B, target_block_bytes // max(1, per_row)))
    if B >= 2:
        # Keep >= 2 grid steps over batch so megacore / v7x's 2 TCs both work.
        TB = min(TB, pl.cdiv(B, 2))
    grid_b = pl.cdiv(B, TB)

    A = _build_avg_matrix(L, kernel_size)

    kernel = functools.partial(_series_decomp_kernel, tb=TB)

    res, mean = pl.pallas_call(
        kernel,
        out_shape=(
            jax.ShapeDtypeStruct((B, L, C), x.dtype),
            jax.ShapeDtypeStruct((B, L, C), x.dtype),
        ),
        grid=(grid_b, grid_c),
        in_specs=[
            pl.BlockSpec((L, L), lambda b, c: (0, 0)),        # A: VMEM-resident
            pl.BlockSpec((TB, L, TC), lambda b, c: (b, 0, c)),
        ],
        out_specs=(
            pl.BlockSpec((TB, L, TC), lambda b, c: (b, 0, c)),
            pl.BlockSpec((TB, L, TC), lambda b, c: (b, 0, c)),
        ),
        compiler_params=pltpu.CompilerParams(
            dimension_semantics=("parallel", "parallel"),
            # Safe on every generation (v7x has only 64 MiB physical VMEM);
            # the matmul variant's footprint stays far below this anyway.
            vmem_limit_bytes=40 * 1024 * 1024,
        ),
    )(A, x)
    return res, mean

# TODO(synk): for production DLinear shapes with tiny C (e.g. 7), a wrapper
# transpose to (B, C, L) would make the output lane dim dense; skipped here to
# keep outputs in the module's native (B, L, C) layout without extra XLA
# transpose traffic.


def _reference(x, kernel_size):
    """Pure-JAX reference mirroring the PyTorch module."""
    pad = (kernel_size - 1) // 2
    front = jnp.repeat(x[:, 0:1, :], pad, axis=1)
    end = jnp.repeat(x[:, -1:, :], pad, axis=1)
    xp = jnp.concatenate([front, x, end], axis=1)
    L = x.shape[1]
    windows = jnp.stack([xp[:, j : j + L, :] for j in range(kernel_size)], axis=0)
    mean = jnp.mean(windows, axis=0)
    return x - mean, mean


if __name__ == "__main__":
    key = jax.random.PRNGKey(0)

    # Main case (small window).
    B, L, C = 2, 16, 8
    x = jax.random.normal(key, (B, L, C), dtype=jnp.float32)
    kernel_size = 5
    res, mean = series_decomp(x, kernel_size)
    res, mean = jax.block_until_ready((res, mean))
    res_ref, mean_ref = _reference(x, kernel_size)
    assert res.shape == (B, L, C) and mean.shape == (B, L, C)
    assert jnp.allclose(mean, mean_ref, atol=1e-5), "moving_mean mismatch (k=5)"
    assert jnp.allclose(res, res_ref, atol=1e-5), "residual mismatch (k=5)"

    # Larger window (exercises heavily-clamped boundary columns of A).
    kernel_size = 9
    res2, mean2 = series_decomp(x, kernel_size)
    res2, mean2 = jax.block_until_ready((res2, mean2))
    res2_ref, mean2_ref = _reference(x, kernel_size)
    assert jnp.allclose(mean2, mean2_ref, atol=1e-5), "moving_mean mismatch (k=9)"
    assert jnp.allclose(res2, res2_ref, atol=1e-5), "residual mismatch (k=9)"

    # Non-divisible batch (B % TB != 0) to exercise masked partial writeback.
    B2, L2, C2 = 3, 24, 8
    x3 = jax.random.normal(jax.random.PRNGKey(1), (B2, L2, C2), dtype=jnp.float32)
    kernel_size = 7
    res3, mean3 = series_decomp(x3, kernel_size)
    res3, mean3 = jax.block_until_ready((res3, mean3))
    res3_ref, mean3_ref = _reference(x3, kernel_size)
    assert jnp.allclose(mean3, mean3_ref, atol=1e-5), "moving_mean mismatch (k=7)"
    assert jnp.allclose(res3, res3_ref, atol=1e-5), "residual mismatch (k=7)"

    print("KERNEL_OK")
</pallas_src>

<mosaic_0001>
module attributes {stable_mosaic.version = 11 : i64} {
  func.func @_series_decomp_kernel(%arg0: i32, %arg1: i32, %arg2: memref<16x16xf32, #tpu.memory_space<vmem>>, %arg3: memref<1x16x8xf32, #tpu.memory_space<vmem>>, %arg4: memref<1x16x8xf32, #tpu.memory_space<vmem>>, %arg5: memref<1x16x8xf32, #tpu.memory_space<vmem>>) attributes {dimension_semantics = [#tpu.dimension_semantics<parallel>, #tpu.dimension_semantics<parallel>], iteration_bounds = array<i64: 2, 1>, scalar_prefetch = 0 : i64, scratch_operands = 0 : i64, tpu.core_type = #tpu.core_type<tc>, window_params = [{pipeline_mode = #tpu.pipeline_mode<synchronous>, transform_indices = @transform_0, window_bounds = array<i64: 16, 16>}, {transform_indices = @transform_1, window_bounds = array<i64: 1, 16, 8>}, {transform_indices = @transform_2, window_bounds = array<i64: 1, 16, 8>}, {transform_indices = @transform_3, window_bounds = array<i64: 1, 16, 8>}]} {
    %c0 = arith.constant 0 : index
    %c0_0 = arith.constant 0 : index
    %0 = vector.load %arg2[%c0, %c0_0] : memref<16x16xf32, #tpu.memory_space<vmem>>, vector<16x16xf32>
    %c0_i32 = arith.constant 0 : i32
    %1 = arith.index_cast %c0_i32 : i32 to index
    %c0_1 = arith.constant 0 : index
    %c0_2 = arith.constant 0 : index
    %2 = vector.load %arg3[%1, %c0_1, %c0_2] : memref<1x16x8xf32, #tpu.memory_space<vmem>>, vector<1x16x8xf32>
    %3 = vector.shape_cast %2 : vector<1x16x8xf32> to vector<16x8xf32>
    %cst = arith.constant dense<0.000000e+00> : vector<16x8xf32>
    %4 = tpu.matmul %0, %3, %cst {dimension_numbers = #tpu.dot_dimension_numbers<[1], [0], [0], [1], [0, 0, 1, 1], [], []>} : vector<16x16xf32>, vector<16x8xf32>, vector<16x8xf32> -> vector<16x8xf32>
    %5 = arith.index_cast %c0_i32 : i32 to index
    %c0_3 = arith.constant 0 : index
    %c0_4 = arith.constant 0 : index
    %6 = vector.load %arg5[%5, %c0_3, %c0_4] : memref<1x16x8xf32, #tpu.memory_space<vmem>>, vector<1x16x8xf32>
    %7 = vector.shape_cast %6 : vector<1x16x8xf32> to vector<16x8xf32>
    %8 = vector.shape_cast %4 : vector<16x8xf32> to vector<1x16x8xf32>
    tpu.vector_store %arg5[%5, %c0_3, %c0_4], %8 {strides = array<i32>} : memref<1x16x8xf32, #tpu.memory_space<vmem>>, vector<1x16x8xf32>,
    %9 = arith.subf %3, %4 : vector<16x8xf32>
    %10 = arith.index_cast %c0_i32 : i32 to index
    %c0_5 = arith.constant 0 : index
    %c0_6 = arith.constant 0 : index
    %11 = vector.load %arg4[%10, %c0_5, %c0_6] : memref<1x16x8xf32, #tpu.memory_space<vmem>>, vector<1x16x8xf32>
    %12 = vector.shape_cast %11 : vector<1x16x8xf32> to vector<16x8xf32>
    %13 = vector.shape_cast %9 : vector<16x8xf32> to vector<1x16x8xf32>
    tpu.vector_store %arg4[%10, %c0_5, %c0_6], %13 {strides = array<i32>} : memref<1x16x8xf32, #tpu.memory_space<vmem>>, vector<1x16x8xf32>,
    %c1_i32 = arith.constant 1 : i32
    return
  }
  func.func @transform_0(%arg0: i32, %arg1: i32) -> (i32, i32) {
    %c0_i32 = arith.constant 0 : i32
    %c0_i32_0 = arith.constant 0 : i32
    %c0_i32_1 = arith.constant 0 : i32
    return %c0_i32, %c0_i32_0 : i32, i32
  }
  func.func @transform_1(%arg0: i32, %arg1: i32) -> (i32, i32, i32) {
    %c0_i32 = arith.constant 0 : i32
    %c0_i32_0 = arith.constant 0 : i32
    return %arg0, %c0_i32, %arg1 : i32, i32, i32
  }
  func.func @transform_2(%arg0: i32, %arg1: i32) -> (i32, i32, i32) {
    %c0_i32 = arith.constant 0 : i32
    %c0_i32_0 = arith.constant 0 : i32
    return %arg0, %c0_i32, %arg1 : i32, i32, i32
  }
  func.func @transform_3(%arg0: i32, %arg1: i32) -> (i32, i32, i32) {
    %c0_i32 = arith.constant 0 : i32
    %c0_i32_0 = arith.constant 0 : i32
    return %arg0, %c0_i32, %arg1 : i32, i32, i32
  }
}

</mosaic_0001>

<llo_original>
// kernel: tpu_custom_call.1
$region0: #{tpu_custom_call.1}
  #allocation0 [shape = 'u32[]', space=smem, size = 0x4, offset = 0x4, fixed_abs, tag = 'smem constant byte address 0x4 - core index']
  #allocation1 [shape = 'u32[72,128]{1,0:T(1,128)}', space=vmem, size = 0x9000, scoped, tag = 'internal scratch']
  %s0 = inlined_call_operand.vmem [shape: f32[16,16], index: 0, kind: input, shape index: {}]
  %s1 = inlined_call_operand.vmem [shape: f32[2,16,8], index: 1, kind: input, shape index: {}]
  %s2 = inlined_call_operand.vmem [shape: f32[2,16,8], index: 2, kind: output, shape index: {0}]
  %s3 = inlined_call_operand.vmem [shape: f32[2,16,8], index: 3, kind: output, shape index: {1}]
  %4 = xla_tuple %s2, %s3
  %s5 = sld [smem:[#allocation0]]
  $region49: #{tpu_custom_call.1} parent=0
    _
  %s7 = ssub.s32 1, %s5
  %s8 = scalar_select 0, %s7, %s5
  loop: start=0, step=1, limit=4
  $region2: #{tpu_custom_call.1} parent=0 // loop_pre_header
    _
  $region3: #{tpu_custom_call.1} parent=0 // loop_header
    %s10 = sphi 0, %s14
    %p11 = scmp.ge.s32.totalorder %s10, 4
    %s17 = sphi 0, %s29
    %s18 = sphi 0, %s25
    %s19 = sphi 0, %s17
    %s20 = sphi 0, %s18
    %s21 = sphi 0, %s19
    %s22 = sphi 0, %s20
    %s30 = sphi 0, %s30
    %s32 = sphi 0, %s30
    %s33 = sphi 0, %s32
    %s47 = sphi 0, %s33
    %s55 = sphi 0, %s57
    %s58 = sphi 0, %s55
    %s59 = sphi 0, %s58
    %s75 = sphi 0, %s59
    %s83 = sphi 0, %s85
    %s86 = sphi 0, %s83
    %s87 = sphi 0, %s86
    %s103 = sphi 0, %s87
    %s111 = sphi 0, %s113
    %s114 = sphi 0, %s111
    %s115 = sphi 0, %s114
    %s131 = sphi 0, %s115
  $region4: #{tpu_custom_call.1} parent=0 // loop_header_branch
    %13 = sbr.rel (%p11) target = $region8
  $region5: #{tpu_custom_call.1} parent=0 // loop_body
    %s15 = ssub.s32 %s10, 1
    %s16 = ssub.s32 %s10, 2
    %s23 = sadd.s32 1, %s18
    %p24 = scmp.ge.s32.totalorder %s23, 1
    %s25 = scalar_select %p24, 0, %s23
    %s26 = sadd.s32 1, %s17
    %s27 = scalar_select %p24, %s26, %s17
    %p28 = scmp.ge.s32.totalorder %s27, 2
    %s29 = scalar_select %p28, 0, %s27
    %s31 = sadd.s32 %s30, 1
    %p34 = scmp.eq.s32.totalorder %s10, 1
    %p35 = scmp.ne.s32.totalorder %s30, %s32
    %p36 = scmp.eq.s32.totalorder %s10, 0
    %p37 = por %p35, %p36
    %p38 = scmp.ne.s32.totalorder %s30, %s32
    %p39 = scmp.eq.s32.totalorder %s15, 1
    %p40 = por %p38, %p39
    %p41 = scmp.ne.s32.totalorder %s32, %s33
    %p42 = scmp.eq.s32.totalorder %s15, 0
    %p43 = por %p41, %p42
    %p44 = scmp.ne.s32.totalorder %s32, %s33
    %p45 = scmp.eq.s32.totalorder %s16, 1
    %p46 = por %p44, %p45
    %p48 = scmp.ne.s32.totalorder %s33, %s47
    %p49 = scmp.eq.s32.totalorder %s16, 0
    %p50 = por %p48, %p49
    %s51 = ssub.s32 %s17, %s29
    %s52 = ssub.s32 %s18, %s25
    %s53 = sor.u32 %s51, %s52
    %p54 = scmp.eq.s32.totalorder %s53, 0
    %s56 = sadd.s32 %s55, 1
    %s57 = scalar_select %p54, %s55, %s56
    %p60 = pneg %p54
    %p61 = scmp.eq.s32.totalorder %s10, 1
    %p62 = por %p60, %p61
    %p63 = scmp.ne.s32.totalorder %s55, %s58
    %p64 = scmp.eq.s32.totalorder %s10, 0
    %p65 = por %p63, %p64
    %p66 = scmp.ne.s32.totalorder %s55, %s58
    %p67 = scmp.eq.s32.totalorder %s15, 1
    %p68 = por %p66, %p67
    %p69 = scmp.ne.s32.totalorder %s58, %s59
    %p70 = scmp.eq.s32.totalorder %s15, 0
    %p71 = por %p69, %p70
    %p72 = scmp.ne.s32.totalorder %s58, %s59
    %p73 = scmp.eq.s32.totalorder %s16, 1
    %p74 = por %p72, %p73
    %p76 = scmp.ne.s32.totalorder %s59, %s75
    %p77 = scmp.eq.s32.totalorder %s16, 0
    %p78 = por %p76, %p77
    %s79 = ssub.s32 %s17, %s29
    %s80 = ssub.s32 %s18, %s25
    %s81 = sor.u32 %s79, %s80
    %p82 = scmp.eq.s32.totalorder %s81, 0
    %s84 = sadd.s32 %s83, 1
    %s85 = scalar_select %p82, %s83, %s84
    %p88 = pneg %p82
    %p89 = scmp.eq.s32.totalorder %s10, 1
    %p90 = por %p88, %p89
    %p91 = scmp.ne.s32.totalorder %s83, %s86
    %p92 = scmp.eq.s32.totalorder %s10, 0
    %p93 = por %p91, %p92
    %p94 = scmp.ne.s32.totalorder %s83, %s86
    %p95 = scmp.eq.s32.totalorder %s15, 1
    %p96 = por %p94, %p95
    %p97 = scmp.ne.s32.totalorder %s86, %s87
    %p98 = scmp.eq.s32.totalorder %s15, 0
    %p99 = por %p97, %p98
    %p100 = scmp.ne.s32.totalorder %s86, %s87
    %p101 = scmp.eq.s32.totalorder %s16, 1
    %p102 = por %p100, %p101
    %p104 = scmp.ne.s32.totalorder %s87, %s103
    %p105 = scmp.eq.s32.totalorder %s16, 0
    %p106 = por %p104, %p105
    %s107 = ssub.s32 %s17, %s29
    %s108 = ssub.s32 %s18, %s25
    %s109 = sor.u32 %s107, %s108
    %p110 = scmp.eq.s32.totalorder %s109, 0
    %s112 = sadd.s32 %s111, 1
    %s113 = scalar_select %p110, %s111, %s112
    %p116 = pneg %p110
    %p117 = scmp.eq.s32.totalorder %s10, 1
    %p118 = por %p116, %p117
    %p119 = scmp.ne.s32.totalorder %s111, %s114
    %p120 = scmp.eq.s32.totalorder %s10, 0
    %p121 = por %p119, %p120
    %p122 = scmp.ne.s32.totalorder %s111, %s114
    %p123 = scmp.eq.s32.totalorder %s15, 1
    %p124 = por %p122, %p123
    %p125 = scmp.ne.s32.totalorder %s114, %s115
    %p126 = scmp.eq.s32.totalorder %s15, 0
    %p127 = por %p125, %p126
    %p128 = scmp.ne.s32.totalorder %s114, %s115
    %p129 = scmp.eq.s32.totalorder %s16, 1
    %p130 = por %p128, %p129
    %p132 = scmp.ne.s32.totalorder %s115, %s131
    %p133 = scmp.eq.s32.totalorder %s16, 0
    %p134 = por %p132, %p133
    %p135 = scmp.le.s32.totalorder 1, %s10
    %p136 = scmp.lt.s32.totalorder %s10, 3
    %p137 = pnand %p135, %p136
    %p138 = pneg %p137
    // Predicated region
    $region9: #{tpu_custom_call.1} parent=5 // pred_check
      _
    $region10: #{tpu_custom_call.1} parent=5 // pred_check_branch
      %140 = sbr.rel (%p137) target = $region12
    $region11: #{tpu_custom_call.1} parent=5 // pred_region
      %s141 = ssub.s32 %s10, 1
      // Predicated region
      $region13: #{tpu_custom_call.1} parent=11 // pred_check
        %p142 = pneg %p43
      $region14: #{tpu_custom_call.1} parent=11 // pred_check_branch
        %144 = sbr.rel (%p142) target = $region16
      $region15: #{tpu_custom_call.1} parent=11 // pred_region
        _
      $region16: #{tpu_custom_call.1} parent=11 // pred_fallthru
        _
    $region12: #{tpu_custom_call.1} parent=5 // pred_fallthru
      _
    %p145 = scmp.lt.s32.totalorder %s10, 2
    // Predicated region
    $region17: #{tpu_custom_call.1} parent=5 // pred_check
      %p146 = pneg %p145
    $region18: #{tpu_custom_call.1} parent=5 // pred_check_branch
      %148 = sbr.rel (%p146) target = $region20
    $region19: #{tpu_custom_call.1} parent=5 // pred_region
      // Predicated region
      $region21: #{tpu_custom_call.1} parent=19 // pred_check
        %p149 = pneg %p65
      $region22: #{tpu_custom_call.1} parent=19 // pred_check_branch
        %151 = sbr.rel (%p149) target = $region24
      $region23: #{tpu_custom_call.1} parent=19 // pred_region
        %p152 = scmp.lt.s32.totalorder %s17, 1
        %s153 = scalar_select %p152, %s17, 1
        %p154 = scmp.lt.s32.totalorder %s18, 0
        %s155 = scalar_select %p154, %s18, 0
        %s156 = smul.addr %s153, 2
        %s157 = sadd.s32 %s155, %s156
        %s158 = smul.addr %s157, 8
        %s159 = scalar_lea.vmem %s1, %s158
      $region24: #{tpu_custom_call.1} parent=19 // pred_fallthru
        _
    $region20: #{tpu_custom_call.1} parent=5 // pred_fallthru
      _
    %p160 = scmp.le.s32.totalorder 1, %s10
    %p161 = scmp.lt.s32.totalorder %s10, 3
    %p162 = pnand %p160, %p161
    %p163 = pneg %p162
    // Predicated region
    $region25: #{tpu_custom_call.1} parent=5 // pred_check
      _
    $region26: #{tpu_custom_call.1} parent=5 // pred_check_branch
      %165 = sbr.rel (%p162) target = $region28
    $region27: #{tpu_custom_call.1} parent=5 // pred_region
      %s166 = ssub.s32 %s10, 1
      %p167 = pneg %p43
      %p168 = pneg %p40
      %p169 = scmp.lt.s32.totalorder %s19, 1
      %s170 = scalar_select %p169, %s19, 1
      %p171 = scmp.lt.s32.totalorder %s20, 0
      %s172 = scalar_select %p171, %s20, 0
      %s173 = smul.addr %s170, 2
      %s174 = sadd.s32 %s172, %s173
      %s175 = smul.addr %s174, 8
      %s176 = scalar_lea.vmem %s1, %s175
      %p177 = pneg %p71
      %p178 = pneg %p68
      %p179 = pneg %p99
      %p180 = pneg %p96
      %p181 = scmp.lt.s32.totalorder %s19, 1
      %s182 = scalar_select %p181, %s19, 1
      %p183 = scmp.lt.s32.totalorder %s20, 0
      %s184 = scalar_select %p183, %s20, 0
      %s185 = smul.addr %s182, 2
      %s186 = sadd.s32 %s184, %s185
      %s187 = smul.addr %s186, 8
      %s188 = scalar_lea.vmem %s2, %s187
      %p189 = pneg %p127
      %p190 = pneg %p124
      %p191 = scmp.lt.s32.totalorder %s19, 1
      %s192 = scalar_select %p191, %s19, 1
      %p193 = scmp.lt.s32.totalorder %s20, 0
      %s194 = scalar_select %p193, %s20, 0
      %s195 = smul.addr %s192, 2
      %s196 = sadd.s32 %s194, %s195
      %s197 = smul.addr %s196, 8
      %s198 = scalar_lea.vmem %s3, %s197
      %p199 = scmp.lt.s32.totalorder %s19, 1
      %s200 = scalar_select %p199, %s19, 1
      %p201 = scmp.lt.s32.totalorder %s20, 0
      %s202 = scalar_select %p201, %s20, 0
      %s203 = smul.addr %s200, 2
      %s204 = sadd.s32 %s202, %s203
      %s205 = smul.addr %s204, 8
      %s206 = scalar_lea.vmem %s1, %s205
      %p207 = scmp.lt.s32.totalorder %s19, 1
      %s208 = scalar_select %p207, %s19, 1
      %p209 = scmp.lt.s32.totalorder %s20, 0
      %s210 = scalar_select %p209, %s20, 0
      %s211 = smul.addr %s208, 2
      %s212 = sadd.s32 %s210, %s211
      %s213 = smul.addr %s212, 8
      %s214 = scalar_lea.vmem %s2, %s213
      %p215 = scmp.lt.s32.totalorder %s19, 1
      %s216 = scalar_select %p215, %s19, 1
      %p217 = scmp.lt.s32.totalorder %s20, 0
      %s218 = scalar_select %p217, %s20, 0
      %s219 = smul.addr %s216, 2
      %s220 = sadd.s32 %s218, %s219
      %s221 = smul.addr %s220, 8
      %s222 = scalar_lea.vmem %s3, %s221
      %v223 = vld [vmem:[%s0] sm:$0xff]
      %v224 = vld [vmem:[%s0 + $0x8] sm:$0xff]
      %v225 = vld [vmem:[%s206] sm:$0xff]
      %v226 = vld [vmem:[%s206 + $0x8] sm:$0xff]
      %vm227 = vcmask 130048
      %v229 = vsel %vm227, %v223, 0
      %v232 = vsel %vm227, %v224, 0
      %234 = vmatpush.msra.mxu0 0.0
      %235 = vmatpush.msra.mxu0 0.0
      %236 = vmatpush.msra.mxu0 0.0
      %237 = vmatpush.msra.mxu0 0.0
      %238 = vmatpush.msra.mxu0 0.0
      %239 = vmatpush.msra.mxu0 0.0
      %240 = vmatpush.msra.mxu0 0.0
      %241 = vmatpush.msra.mxu0 0.0
      %242 = vmatpush.msra.mxu0 0.0
      %243 = vmatpush.msra.mxu0 0.0
      %244 = vmatpush.msra.mxu0 0.0
      %245 = vmatpush.msra.mxu0 0.0
      %246 = vmatpush.msra.mxu0 0.0
      %247 = vmatpush.msra.mxu0 0.0
      %248 = vmatpush.msra.mxu0 %v226
      %249 = vmatpush.msra.mxu0 %v225
      %250 = vmatmul.f32.gmra.mxu0 %v229
      %v251 = vpop.f32.mrf.mxu0
      %v252 = vadd.f32 0.0, %v251
      %253 = vmatmul.f32.gmra.mxu0 %v232
      %v254 = vpop.f32.mrf.mxu0
      %v255 = vadd.f32 0.0, %v254
      %256 = vdwg.mxu0
      %vm257 = vcmask 64512
      %258 = vst.msk [vmem:[%s222] sm:$0xff] %vm257, %v252
      %259 = vst.msk [vmem:[%s222 + $0x8] sm:$0xff] %vm257, %v255
      %v260 = vsub.f32 %v225, %v252
      %v261 = vsub.f32 %v226, %v255
      %262 = vst.msk [vmem:[%s214] sm:$0xff] %vm257, %v260
      %263 = vst.msk [vmem:[%s214 + $0x8] sm:$0xff] %vm257, %v261
      %p264 = scmp.lt.s32.totalorder %s19, 1
      %s265 = scalar_select %p264, %s19, 1
      %p266 = scmp.lt.s32.totalorder %s20, 0
      %s267 = scalar_select %p266, %s20, 0
      %s268 = smul.addr %s265, 2
      %s269 = sadd.s32 %s267, %s268
      %s270 = smul.addr %s269, 8
      %s271 = scalar_lea.vmem %s2, %s270
      %p272 = scmp.lt.s32.totalorder %s19, 1
      %s273 = scalar_select %p272, %s19, 1
      %p274 = scmp.lt.s32.totalorder %s20, 0
      %s275 = scalar_select %p274, %s20, 0
      %s276 = smul.addr %s273, 2
      %s277 = sadd.s32 %s275, %s276
      %s278 = smul.addr %s277, 8
      %s279 = scalar_lea.vmem %s3, %s278
      // Predicated region
      $region29: #{tpu_custom_call.1} parent=27 // pred_check
        %p280 = pneg %p96
      $region30: #{tpu_custom_call.1} parent=27 // pred_check_branch
        %282 = sbr.rel (%p280) target = $region32
      $region31: #{tpu_custom_call.1} parent=27 // pred_region
        _
      $region32: #{tpu_custom_call.1} parent=27 // pred_fallthru
        _
      // Predicated region
      $region33: #{tpu_custom_call.1} parent=27 // pred_check
        %p283 = pneg %p124
      $region34: #{tpu_custom_call.1} parent=27 // pred_check_branch
        %285 = sbr.rel (%p283) target = $region36
      $region35: #{tpu_custom_call.1} parent=27 // pred_region
        _
      $region36: #{tpu_custom_call.1} parent=27 // pred_fallthru
        _
    $region28: #{tpu_custom_call.1} parent=5 // pred_fallthru
      _
    %p286 = scmp.le.s32.totalorder 2, %s10
    // Predicated region
    $region37: #{tpu_custom_call.1} parent=5 // pred_check
      %p287 = pneg %p286
    $region38: #{tpu_custom_call.1} parent=5 // pred_check_branch
      %289 = sbr.rel (%p287) target = $region40
    $region39: #{tpu_custom_call.1} parent=5 // pred_region
      %s290 = ssub.s32 %s10, 2
      // Predicated region
      $region41: #{tpu_custom_call.1} parent=39 // pred_check
        %p291 = pneg %p102
      $region42: #{tpu_custom_call.1} parent=39 // pred_check_branch
        %293 = sbr.rel (%p291) target = $region44
      $region43: #{tpu_custom_call.1} parent=39 // pred_region
        %p294 = scmp.lt.s32.totalorder %s21, 1
        %s295 = scalar_select %p294, %s21, 1
        %p296 = scmp.lt.s32.totalorder %s22, 0
        %s297 = scalar_select %p296, %s22, 0
        %s298 = smul.addr %s295, 2
        %s299 = sadd.s32 %s297, %s298
        %s300 = smul.addr %s299, 8
        %s301 = scalar_lea.vmem %s2, %s300
      $region44: #{tpu_custom_call.1} parent=39 // pred_fallthru
        _
      // Predicated region
      $region45: #{tpu_custom_call.1} parent=39 // pred_check
        %p302 = pneg %p130
      $region46: #{tpu_custom_call.1} parent=39 // pred_check_branch
        %304 = sbr.rel (%p302) target = $region48
      $region47: #{tpu_custom_call.1} parent=39 // pred_region
        %p305 = scmp.lt.s32.totalorder %s21, 1
        %s306 = scalar_select %p305, %s21, 1
        %p307 = scmp.lt.s32.totalorder %s22, 0
        %s308 = scalar_select %p307, %s22, 0
        %s309 = smul.addr %s306, 2
        %s310 = sadd.s32 %s308, %s309
        %s311 = smul.addr %s310, 8
        %s312 = scalar_lea.vmem %s3, %s311
      $region48: #{tpu_custom_call.1} parent=39 // pred_fallthru
        _
    $region40: #{tpu_custom_call.1} parent=5 // pred_fallthru
      _
  $region6: #{tpu_custom_call.1} parent=0 // loop_footer
    %s14 = sadd.s32 1, %s10
  $region7: #{tpu_custom_call.1} parent=0 // loop_footer_branch
    %9 = sbr.rel target = $region3
  $region8: #{tpu_custom_call.1} parent=0 // loop_exit
    _

</llo_original>
